<compile_context>
chip_gen: v5e
topology: v5e:2x2
jax: 0.10.0
libtpu: 0.0.40
codegen_flags: <defaults>
</compile_context>

<pallas_src>
import jax
import jax.numpy as jnp
from jax.experimental import pallas as pl
from jax.experimental.pallas import tpu as pltpu

_LANE = 128


def _embedding_self_kernel(x_ref, w_ref, b_ref, o_ref):
    # x_ref: (TB, Dp); w_ref/b_ref: (E, Dp) VMEM-resident; o_ref: (TB, E*Dp).
    # Each per-e FMA result is stored directly to its lane-aligned sub-slice
    # of the output slab (no concatenate, no slab-sized VMEM temporary).
    x = x_ref[...]                                   # (TB, Dp)
    E, Dp = w_ref.shape
    for e in range(E):                               # static unrolled loop
        part = x * w_ref[e:e + 1, :] + b_ref[e:e + 1, :]     # (TB, Dp) FMA
        o_ref[:, e * Dp:(e + 1) * Dp] = part.astype(o_ref.dtype)


def _pick_batch_tile(B, Dp, E, x_itemsize, out_itemsize,
                     vmem_budget_bytes=12 * 1024 * 1024):
    """Largest batch tile whose double-buffered x + out blocks fit the budget.

    Budget (12 MiB) is conservative so the same tiling is legal under v5e's
    16 MiB scoped-VMEM default and v7x's 64 MiB physical VMEM.  The cap is
    2048 rows (amortizes per-step overhead), but at least ~4 grid steps are
    kept for moderate/large B so the "parallel" grid axis can be sharded
    across v7x's two TensorCores.
    """
    per_row = 2 * (x_itemsize * Dp + out_itemsize * E * Dp)   # double-buffered
    max_rows = max(8, vmem_budget_bytes // per_row)
    if B <= 8:
        return B                                     # tiny batch: one full tile
    cap = min(B, max_rows, 2048)
    min_steps = 4 if B >= 64 else 2                  # keep both TCs busy (v7x)
    cap = min(cap, max(8, B // min_steps))
    cap = max(8, (cap // 8) * 8)                     # multiple of 8 (sublane)
    # Prefer a multiple of 8 that divides B exactly (no ragged edge block).
    for tb in range(cap, 7, -8):
        if B % tb == 0:
            return tb
    return cap                                       # ragged edge: Pallas masks it


def embedding_self_pallas(x, w_stacked, b_stacked, *, out_dtype=None):
    """x: (B, D); w_stacked, b_stacked: (E, D)  ->  (B, E, D).

    Pass out_dtype=jnp.bfloat16 on v6e/v7x to cut the (dominant) output HBM
    traffic ~1.6x; default keeps the input dtype (exact f32 path).
    """
    B, D = x.shape
    E, D_w = w_stacked.shape
    assert D_w == D and b_stacked.shape == (E, D)
    out_dtype = x.dtype if out_dtype is None else jnp.dtype(out_dtype)

    # Pad the feature axis to a lane multiple so every per-e output segment is
    # lane-aligned -> fully dense (unmasked) stores.  Sliced off afterwards.
    Dp = ((D + _LANE - 1) // _LANE) * _LANE
    if Dp != D:
        pad = Dp - D
        x_p = jnp.pad(x, ((0, 0), (0, pad)))
        w_p = jnp.pad(w_stacked, ((0, 0), (0, pad)))
        b_p = jnp.pad(b_stacked, ((0, 0), (0, pad)))
    else:
        x_p, w_p, b_p = x, w_stacked, b_stacked

    x_isz = jnp.dtype(x.dtype).itemsize
    o_isz = jnp.dtype(out_dtype).itemsize
    TB = _pick_batch_tile(B, Dp, E, x_isz, o_isz)
    grid = (pl.cdiv(B, TB),)

    # Explicit scoped-VMEM limit sized from the chosen tile (double-buffered
    # x + out tiles, plus resident/double-buffered w & b), with headroom.
    wb_bytes = E * Dp * (jnp.dtype(w_p.dtype).itemsize
                         + jnp.dtype(b_p.dtype).itemsize)
    needed = 2 * (TB * Dp * x_isz + TB * E * Dp * o_isz) + 2 * wb_bytes
    vmem_limit = int(min(48 << 20, max(needed + (4 << 20), 16 << 20)))

    out2d = pl.pallas_call(
        _embedding_self_kernel,
        out_shape=jax.ShapeDtypeStruct((B, E * Dp), out_dtype),
        grid=grid,
        in_specs=[
            pl.BlockSpec((TB, Dp), lambda i: (i, 0)),   # batch-tiled input
            pl.BlockSpec((E, Dp), lambda i: (0, 0)),    # weights: VMEM-resident
            pl.BlockSpec((E, Dp), lambda i: (0, 0)),    # biases:  VMEM-resident
        ],
        out_specs=pl.BlockSpec((TB, E * Dp), lambda i: (i, 0)),  # lane-dense slab
        compiler_params=pltpu.CompilerParams(
            dimension_semantics=("parallel",),          # independent batch tiles
            vmem_limit_bytes=vmem_limit),
    )(x_p, w_p, b_p)

    # Layout plumbing only: row-major (B, E*Dp) == (B, E, Dp), then drop pad.
    out = out2d.reshape(B, E, Dp)
    if Dp != D:
        out = out[:, :, :D]
    return out


def init_params(key, dim_input, emb_input=1, emb_output=4):
    """Deterministic init mimicking nn.Linear(emb_input, emb_output) per feature.

    nn.Linear(1, E) weight has shape (E, 1); kaiming-uniform bound = 1/sqrt(fan_in).
    The dim_input independent layers are stacked into (E, D) weight/bias tensors.
    """
    kw, kb = jax.random.split(key)
    bound = 1.0 / jnp.sqrt(float(emb_input))
    w_stacked = jax.random.uniform(
        kw, (emb_output, dim_input), jnp.float32, minval=-bound, maxval=bound)
    b_stacked = jax.random.uniform(
        kb, (emb_output, dim_input), jnp.float32, minval=-bound, maxval=bound)
    return w_stacked, b_stacked


def embedding_self_reference(x, w_stacked, b_stacked):
    # Pure-JAX reference replicating the PyTorch loop + permute(0, 2, 1).
    return x[:, None, :] * w_stacked[None, :, :] + b_stacked[None, :, :]


if __name__ == "__main__":
    key = jax.random.PRNGKey(0)
    k_x, k_p, k_x2, k_p2 = jax.random.split(key, 4)

    # Small demo shapes consistent with the module defaults (batch=2, dim_input=16).
    batch, dim_input, emb_output = 2, 16, 4
    x = jax.random.normal(k_x, (batch, dim_input), dtype=jnp.float32)
    w_stacked, b_stacked = init_params(k_p, dim_input, emb_output=emb_output)

    out = jax.block_until_ready(embedding_self_pallas(x, w_stacked, b_stacked))
    ref = embedding_self_reference(x, w_stacked, b_stacked)
    assert out.shape == (batch, emb_output, dim_input)
    assert jnp.allclose(out, ref, atol=1e-6, rtol=1e-6)

    # Moderate shape to exercise the batch-tiled, multi-step grid path
    # (lane-aligned D, multiple grid steps, direct per-e stores).
    B2, D2, E2 = 256, 128, 4
    x2 = jax.random.normal(k_x2, (B2, D2), dtype=jnp.float32)
    w2, b2 = init_params(k_p2, D2, emb_output=E2)
    out2 = jax.block_until_ready(embedding_self_pallas(x2, w2, b2))
    ref2 = embedding_self_reference(x2, w2, b2)
    assert out2.shape == (B2, E2, D2)
    assert jnp.allclose(out2, ref2, atol=1e-6, rtol=1e-6)

    # bf16-output path (v6e/v7x HBM-traffic saver); looser tolerance expected.
    out_bf16 = jax.block_until_ready(
        embedding_self_pallas(x2, w2, b2, out_dtype=jnp.bfloat16))
    assert out_bf16.dtype == jnp.bfloat16
    assert jnp.allclose(out_bf16.astype(jnp.float32), ref2, atol=2e-2, rtol=2e-2)

    print("KERNEL_OK")
</pallas_src>

<mosaic_0001>
module attributes {stable_mosaic.version = 11 : i64} {
  func.func @_embedding_self_kernel(%arg0: i32, %arg1: memref<2x128xf32, #tpu.memory_space<vmem>>, %arg2: memref<4x128xf32, #tpu.memory_space<vmem>>, %arg3: memref<4x128xf32, #tpu.memory_space<vmem>>, %arg4: memref<2x512xf32, #tpu.memory_space<vmem>>) attributes {dimension_semantics = [#tpu.dimension_semantics<parallel>], iteration_bounds = array<i64: 1>, scalar_prefetch = 0 : i64, scratch_operands = 0 : i64, tpu.core_type = #tpu.core_type<tc>, window_params = [{transform_indices = @transform_0, window_bounds = array<i64: 2, 128>}, {pipeline_mode = #tpu.pipeline_mode<synchronous>, transform_indices = @transform_1, window_bounds = array<i64: 4, 128>}, {pipeline_mode = #tpu.pipeline_mode<synchronous>, transform_indices = @transform_2, window_bounds = array<i64: 4, 128>}, {transform_indices = @transform_3, window_bounds = array<i64: 2, 512>}]} {
    %c0 = arith.constant 0 : index
    %c0_0 = arith.constant 0 : index
    %0 = vector.load %arg1[%c0, %c0_0] : memref<2x128xf32, #tpu.memory_space<vmem>>, vector<2x128xf32>
    %c0_1 = arith.constant 0 : index
    %c0_2 = arith.constant 0 : index
    %1 = vector.load %arg2[%c0_1, %c0_2] : memref<4x128xf32, #tpu.memory_space<vmem>>, vector<1x128xf32>
    %2 = vector.broadcast %1 : vector<1x128xf32> to vector<2x128xf32>
    %3 = arith.mulf %0, %2 : vector<2x128xf32>
    %c0_3 = arith.constant 0 : index
    %c0_4 = arith.constant 0 : index
    %4 = vector.load %arg3[%c0_3, %c0_4] : memref<4x128xf32, #tpu.memory_space<vmem>>, vector<1x128xf32>
    %5 = vector.broadcast %4 : vector<1x128xf32> to vector<2x128xf32>
    %6 = arith.addf %3, %5 : vector<2x128xf32>
    %c0_5 = arith.constant 0 : index
    %c0_6 = arith.constant 0 : index
    %7 = vector.load %arg4[%c0_5, %c0_6] : memref<2x512xf32, #tpu.memory_space<vmem>>, vector<2x128xf32>
    tpu.vector_store %arg4[%c0_5, %c0_6], %6 {strides = array<i32>} : memref<2x512xf32, #tpu.memory_space<vmem>>, vector<2x128xf32>,
    %c1 = arith.constant 1 : index
    %c0_7 = arith.constant 0 : index
    %8 = vector.load %arg2[%c1, %c0_7] : memref<4x128xf32, #tpu.memory_space<vmem>>, vector<1x128xf32>
    %9 = vector.broadcast %8 : vector<1x128xf32> to vector<2x128xf32>
    %10 = arith.mulf %0, %9 : vector<2x128xf32>
    %c1_8 = arith.constant 1 : index
    %c0_9 = arith.constant 0 : index
    %11 = vector.load %arg3[%c1_8, %c0_9] : memref<4x128xf32, #tpu.memory_space<vmem>>, vector<1x128xf32>
    %12 = vector.broadcast %11 : vector<1x128xf32> to vector<2x128xf32>
    %13 = arith.addf %10, %12 : vector<2x128xf32>
    %c0_10 = arith.constant 0 : index
    %c128 = arith.constant 128 : index
    %14 = vector.load %arg4[%c0_10, %c128] : memref<2x512xf32, #tpu.memory_space<vmem>>, vector<2x128xf32>
    tpu.vector_store %arg4[%c0_10, %c128], %13 {strides = array<i32>} : memref<2x512xf32, #tpu.memory_space<vmem>>, vector<2x128xf32>,
    %c2 = arith.constant 2 : index
    %c0_11 = arith.constant 0 : index
    %15 = vector.load %arg2[%c2, %c0_11] : memref<4x128xf32, #tpu.memory_space<vmem>>, vector<1x128xf32>
    %16 = vector.broadcast %15 : vector<1x128xf32> to vector<2x128xf32>
    %17 = arith.mulf %0, %16 : vector<2x128xf32>
    %c2_12 = arith.constant 2 : index
    %c0_13 = arith.constant 0 : index
    %18 = vector.load %arg3[%c2_12, %c0_13] : memref<4x128xf32, #tpu.memory_space<vmem>>, vector<1x128xf32>
    %19 = vector.broadcast %18 : vector<1x128xf32> to vector<2x128xf32>
    %20 = arith.addf %17, %19 : vector<2x128xf32>
    %c0_14 = arith.constant 0 : index
    %c256 = arith.constant 256 : index
    %21 = vector.load %arg4[%c0_14, %c256] : memref<2x512xf32, #tpu.memory_space<vmem>>, vector<2x128xf32>
    tpu.vector_store %arg4[%c0_14, %c256], %20 {strides = array<i32>} : memref<2x512xf32, #tpu.memory_space<vmem>>, vector<2x128xf32>,
    %c3 = arith.constant 3 : index
    %c0_15 = arith.constant 0 : index
    %22 = vector.load %arg2[%c3, %c0_15] : memref<4x128xf32, #tpu.memory_space<vmem>>, vector<1x128xf32>
    %23 = vector.broadcast %22 : vector<1x128xf32> to vector<2x128xf32>
    %24 = arith.mulf %0, %23 : vector<2x128xf32>
    %c3_16 = arith.constant 3 : index
    %c0_17 = arith.constant 0 : index
    %25 = vector.load %arg3[%c3_16, %c0_17] : memref<4x128xf32, #tpu.memory_space<vmem>>, vector<1x128xf32>
    %26 = vector.broadcast %25 : vector<1x128xf32> to vector<2x128xf32>
    %27 = arith.addf %24, %26 : vector<2x128xf32>
    %c0_18 = arith.constant 0 : index
    %c384 = arith.constant 384 : index
    %28 = vector.load %arg4[%c0_18, %c384] : memref<2x512xf32, #tpu.memory_space<vmem>>, vector<2x128xf32>
    tpu.vector_store %arg4[%c0_18, %c384], %27 {strides = array<i32>} : memref<2x512xf32, #tpu.memory_space<vmem>>, vector<2x128xf32>,
    return
  }
  func.func @transform_0(%arg0: i32) -> (i32, i32) {
    %c0_i32 = arith.constant 0 : i32
    %c0_i32_0 = arith.constant 0 : i32
    return %arg0, %c0_i32 : i32, i32
  }
  func.func @transform_1(%arg0: i32) -> (i32, i32) {
    %c0_i32 = arith.constant 0 : i32
    %c0_i32_0 = arith.constant 0 : i32
    %c0_i32_1 = arith.constant 0 : i32
    return %c0_i32, %c0_i32_0 : i32, i32
  }
  func.func @transform_2(%arg0: i32) -> (i32, i32) {
    %c0_i32 = arith.constant 0 : i32
    %c0_i32_0 = arith.constant 0 : i32
    %c0_i32_1 = arith.constant 0 : i32
    return %c0_i32, %c0_i32_0 : i32, i32
  }
  func.func @transform_3(%arg0: i32) -> (i32, i32) {
    %c0_i32 = arith.constant 0 : i32
    %c0_i32_0 = arith.constant 0 : i32
    return %arg0, %c0_i32 : i32, i32
  }
}

</mosaic_0001>

<llo_original>
// kernel: tpu_custom_call.1
$region0: #{tpu_custom_call.1}
  #allocation0 [shape = 'u32[]', space=smem, size = 0x4, offset = 0x4, fixed_abs, tag = 'smem constant byte address 0x4 - core index']
  #allocation1 [shape = 'u32[72,128]{1,0:T(1,128)}', space=vmem, size = 0x9000, scoped, tag = 'internal scratch']
  %s0 = inlined_call_operand.hbm [shape: f32[2,128], index: 0, kind: input, shape index: {}]
  %s1 = inlined_call_operand.hbm [shape: f32[4,128], index: 1, kind: input, shape index: {}]
  %s2 = inlined_call_operand.hbm [shape: f32[4,128], index: 2, kind: input, shape index: {}]
  %s3 = inlined_call_operand.hbm [shape: f32[2,512], index: 3, kind: output, shape index: {}]
  %s4 = sld [smem:[#allocation0]]
  $region34: #{tpu_custom_call.1} parent=0
    _
  %s6 = ssub.s32 1, %s4
  %s7 = scalar_select 0, %s6, %s4
  $region1: #{tpu_custom_call.1} parent=0
    #allocation2 [shape = 'u8[1024]{0}', space=vmem, size = 0x400, scoped, tag = 'input window, operand 0, single buffered']
    #allocation3 [shape = 's32[1]{0}', space=sflag, size = 0x4, scoped, tag = 'scoped memory for tpu_custom_call.1']
    #allocation4 [shape = 's32[1]{0}', space=sflag, size = 0x4, scoped, tag = 'scoped memory for tpu_custom_call.1']
    #allocation5 [shape = 'u8[2048]{0}', space=vmem, size = 0x800, scoped, tag = 'input window, operand 1, single buffered']
    #allocation6 [shape = 's32[1]{0}', space=sflag, size = 0x4, scoped, tag = 'scoped memory for tpu_custom_call.1']
    #allocation7 [shape = 'u8[2048]{0}', space=vmem, size = 0x800, scoped, tag = 'input window, operand 2, single buffered']
    #allocation8 [shape = 'u8[4096]{0}', space=vmem, size = 0x1000, scoped, tag = 'output window, operand 0, single buffered']
    %8 = vsyncpa [#allocation3], 0
    %9 = vsyncpa [#allocation6], 0
    %10 = vsyncpa [#allocation4], 0
    // Predicated region
    $region2: #{tpu_custom_call.1} parent=1 // pred_check
      _
    $region3: #{tpu_custom_call.1} parent=1 // pred_check_branch
      %12 = sbr.rel (0) target = $region5
    $region4: #{tpu_custom_call.1} parent=1 // pred_region
      %14 = vsyncadd [#allocation3], 0
      %s16 = sshll.u32 %s0, 4
      %s17 = int_to_ptr.hbm [resolvable:$true] %s16
      %s18 = sshll.u32 [#allocation2], 4
      %s19 = int_to_ptr.vmem [resolvable:$true] %s18
      %21 = dma.hbm_to_vmem [thread:$0]  %s17, 32, %s19, [#allocation3]
    $region5: #{tpu_custom_call.1} parent=1 // pred_fallthru
      _
    // Predicated region
    $region6: #{tpu_custom_call.1} parent=1 // pred_check
      _
    $region7: #{tpu_custom_call.1} parent=1 // pred_check_branch
      %23 = sbr.rel (0) target = $region9
    $region8: #{tpu_custom_call.1} parent=1 // pred_region
      %25 = vsyncadd [#allocation6], 0
      %s27 = sshll.u32 %s1, 4
      %s28 = int_to_ptr.hbm [resolvable:$true] %s27
      %s29 = sshll.u32 [#allocation5], 4
      %s30 = int_to_ptr.vmem [resolvable:$true] %s29
      %32 = dma.hbm_to_vmem [thread:$0]  %s28, 64, %s30, [#allocation6]
    $region9: #{tpu_custom_call.1} parent=1 // pred_fallthru
      _
    // Predicated region
    $region10: #{tpu_custom_call.1} parent=1 // pred_check
      _
    $region11: #{tpu_custom_call.1} parent=1 // pred_check_branch
      %34 = sbr.rel (0) target = $region13
    $region12: #{tpu_custom_call.1} parent=1 // pred_region
      %36 = vsyncadd [#allocation6], 0
      %s38 = sshll.u32 %s2, 4
      %s39 = int_to_ptr.hbm [resolvable:$true] %s38
      %s40 = sshll.u32 [#allocation7], 4
      %s41 = int_to_ptr.vmem [resolvable:$true] %s40
      %43 = dma.hbm_to_vmem [thread:$0]  %s39, 64, %s41, [#allocation6]
    $region13: #{tpu_custom_call.1} parent=1 // pred_fallthru
      _
    // Predicated region
    $region14: #{tpu_custom_call.1} parent=1 // pred_check
      _
    $region15: #{tpu_custom_call.1} parent=1 // pred_check_branch
      %45 = sbr.rel (0) target = $region17
    $region16: #{tpu_custom_call.1} parent=1 // pred_region
      %47 = dma.done [#allocation3], 32
    $region17: #{tpu_custom_call.1} parent=1 // pred_fallthru
      _
    // Predicated region
    $region18: #{tpu_custom_call.1} parent=1 // pred_check
      _
    $region19: #{tpu_custom_call.1} parent=1 // pred_check_branch
      %49 = sbr.rel (0) target = $region21
    $region20: #{tpu_custom_call.1} parent=1 // pred_region
      %51 = dma.done [#allocation6], 64
    $region21: #{tpu_custom_call.1} parent=1 // pred_fallthru
      _
    // Predicated region
    $region22: #{tpu_custom_call.1} parent=1 // pred_check
      _
    $region23: #{tpu_custom_call.1} parent=1 // pred_check_branch
      %53 = sbr.rel (0) target = $region25
    $region24: #{tpu_custom_call.1} parent=1 // pred_region
      %55 = dma.done [#allocation6], 64
    $region25: #{tpu_custom_call.1} parent=1 // pred_fallthru
      _
    %v56 = vld [vmem:[#allocation2] sm:$0x3]
    %v57 = vld [vmem:[#allocation5] sm:$0x1]
    %v58 = vperm.slane %v57, 0
    %v59 = vmul.f32 %v56, %v58
    %v60 = vld [vmem:[#allocation7] sm:$0x1]
    %v61 = vperm.slane %v60, 0
    %v62 = vadd.f32 %v59, %v61
    %63 = vst [vmem:[#allocation8] sm:$0x3] %v62
    %v64 = vld [vmem:[#allocation5 + $0x1] sm:$0x1]
    %v65 = vperm.slane %v64, 0
    %v66 = vmul.f32 %v56, %v65
    %v67 = vld [vmem:[#allocation7 + $0x1] sm:$0x1]
    %v68 = vperm.slane %v67, 0
    %v69 = vadd.f32 %v66, %v68
    %70 = vst [vmem:[#allocation8 + $0x2] sm:$0x3] %v69
    %v71 = vld [vmem:[#allocation5 + $0x2] sm:$0x1]
    %v72 = vperm.slane %v71, 0
    %v73 = vmul.f32 %v56, %v72
    %v74 = vld [vmem:[#allocation7 + $0x2] sm:$0x1]
    %v75 = vperm.slane %v74, 0
    %v76 = vadd.f32 %v73, %v75
    %77 = vst [vmem:[#allocation8 + $0x4] sm:$0x3] %v76
    %v78 = vld [vmem:[#allocation5 + $0x3] sm:$0x1]
    %v79 = vperm.slane %v78, 0
    %v80 = vmul.f32 %v56, %v79
    %v81 = vld [vmem:[#allocation7 + $0x3] sm:$0x1]
    %v82 = vperm.slane %v81, 0
    %v83 = vadd.f32 %v80, %v82
    %84 = vst [vmem:[#allocation8 + $0x6] sm:$0x3] %v83
    // Predicated region
    $region26: #{tpu_custom_call.1} parent=1 // pred_check
      _
    $region27: #{tpu_custom_call.1} parent=1 // pred_check_branch
      %86 = sbr.rel (0) target = $region29
    $region28: #{tpu_custom_call.1} parent=1 // pred_region
      %88 = vsyncadd [#allocation4], 0
      %s90 = sshll.u32 [#allocation8], 4
      %s91 = int_to_ptr.vmem [resolvable:$true] %s90
      %s92 = sshll.u32 %s3, 4
      %s93 = int_to_ptr.hbm [resolvable:$true] %s92
      %95 = dma.vmem_to_hbm [thread:$0]  %s91, 128, %s93, [#allocation4]
    $region29: #{tpu_custom_call.1} parent=1 // pred_fallthru
      _
    // Predicated region
    $region30: #{tpu_custom_call.1} parent=1 // pred_check
      _
    $region31: #{tpu_custom_call.1} parent=1 // pred_check_branch
      %97 = sbr.rel (0) target = $region33
    $region32: #{tpu_custom_call.1} parent=1 // pred_region
      %99 = dma.done [#allocation4], 128
    $region33: #{tpu_custom_call.1} parent=1 // pred_fallthru
      _
    %100 = vsyncpa [#allocation3], 1
    %101 = vsyncpa [#allocation6], 1
    %102 = vsyncpa [#allocation4], 1

</llo_original>
